<compile_context>
chip_gen: v7x
topology: tpu7x:2x2x1
jax: 0.10.0
libtpu: 0.0.40
codegen_flags: <defaults>
</compile_context>

<pallas_src>
import math

import jax
import jax.numpy as jnp
from jax.experimental import pallas as pl
from jax.experimental.pallas import tpu as pltpu


def _pe_add_kernel(x_ref, pe_ref, o_ref):
    # x_ref / o_ref block: (tb, tile_r, 128); pe_ref block: (tile_r, 128).
    # PE broadcasts over the leading (batch) block dim.
    o_ref[...] = x_ref[...] + pe_ref[...]


def make_positional_encoding(d_model: int, max_len: int = 5000) -> jnp.ndarray:
    """Deterministic buffer construction, mirrors PyTorch __init__ (odd d_model safe)."""
    position = jnp.arange(0, max_len, dtype=jnp.float32)[:, None]            # (max_len, 1)
    div_term = jnp.exp(
        jnp.arange(0, d_model, 2, dtype=jnp.float32) * (-math.log(10000.0) / d_model)
    )                                                                        # (ceil(D/2),)
    angles = position * div_term                                             # (max_len, ceil(D/2))
    pe = jnp.zeros((max_len, d_model), dtype=jnp.float32)
    pe = pe.at[:, 0::2].set(jnp.sin(angles)[:, : (d_model + 1) // 2])
    pe = pe.at[:, 1::2].set(jnp.cos(angles)[:, : d_model // 2])
    return pe                                                                # (max_len, d_model)


def _target_block_bytes() -> int:
    """~4 MiB blocks, gated by the generation's VMEM (v7x has half of v5e/v6e)."""
    try:
        vmem = int(getattr(pltpu.get_tpu_info(), "vmem_capacity_bytes", 64 << 20))
    except Exception:  # no TPU info available at trace time -> assume smallest (v7x)
        vmem = 64 << 20
    # 3 arrays (x, pe, out) x 2 pipeline buffers must stay well under the 32 MiB
    # scoped limit requested below.
    return int(min(4 << 20, max(1 << 20, vmem // 16)))


def positional_encoding_forward(x: jnp.ndarray, pe: jnp.ndarray, *, donate_x: bool = False):
    """x: [B, T, D], pe: [max_len, D] -> [B, T, D]  (== x + pe[None, :T, :])."""
    B, T, D = x.shape
    orig_T = T

    # Cast once outside the kernel (avoids per-element up/down-casts on the VPU and
    # halves PE traffic for bf16).  PyTorch would promote bf16 x to f32 here instead.
    pe_slice = pe[:T, :].astype(x.dtype)

    # --- Lane-dense layout: pad T minimally so (T * D) % 128 == 0. ---------------------
    lanes = 128
    row_quantum = lanes // math.gcd(D, lanes)     # smallest t with (t * D) % 128 == 0
    pad_t = (-T) % row_quantum
    if pad_t:
        # TODO(synk): for very large ragged inputs, fusing this pad into the producer
        # (or handling the tail with a masked-store block) would avoid the extra copy.
        x = jnp.pad(x, ((0, 0), (0, pad_t), (0, 0)))
        pe_slice = jnp.pad(pe_slice, ((0, pad_t), (0, 0)))
        T = T + pad_t
    rows = (T * D) // lanes

    x2 = x.reshape(B, rows, lanes)                # contiguous collapse: free reshape
    pe2 = pe_slice.reshape(rows, lanes)

    # --- Tile sizing: big blocks (~4 MiB), batch folding when one plane is small. ------
    itemsize = jnp.dtype(x.dtype).itemsize
    sublane = 32 // itemsize                      # 8 f32, 16 bf16, 32 int8/fp8
    target = _target_block_bytes()
    plane_bytes = rows * lanes * itemsize

    if plane_bytes >= target or B == 1:
        tb = 1
        max_rows = max(sublane, target // (lanes * itemsize))
        if rows <= max_rows:
            tile_r = rows                         # full extent: always legal
        else:
            tile_r = max(sublane, (max_rows // sublane) * sublane)
    else:
        # One (T, D) plane is small: fold several batch elements into each block so the
        # DMAs reach the HBM-roofline knee and grid-step overhead is amortized.
        tb = min(B, max(1, target // plane_bytes))
        while B % tb != 0:                        # avoid partial leading-dim blocks
            tb -= 1
        tile_r = rows
    num_r = pl.cdiv(rows, tile_r)
    num_b = B // tb

    # Put the long (row-tile) axis outermost and mark it "parallel" so the v7x 2-TC
    # split lands on it; batch stays innermost so the shared PE tile is not re-DMA'd.
    # If only the batch axis is non-trivial, let the cores split that instead.
    if num_r > 1 or num_b == 1:
        dims = ("parallel", "arbitrary")
    else:
        dims = ("arbitrary", "parallel")

    bytes_accessed = (2 * B + 1) * rows * lanes * itemsize   # read x, write out, read pe once

    out2 = pl.pallas_call(
        _pe_add_kernel,
        out_shape=jax.ShapeDtypeStruct((B, rows, lanes), x.dtype),
        grid_spec=pltpu.PrefetchScalarGridSpec(
            num_scalar_prefetch=0,
            grid=(num_r, num_b),
            in_specs=[
                pl.BlockSpec((tb, tile_r, lanes), lambda r, b: (b, r, 0)),   # x tile
                pl.BlockSpec((tile_r, lanes), lambda r, b: (r, 0)),          # shared PE tile
            ],
            out_specs=pl.BlockSpec((tb, tile_r, lanes), lambda r, b: (b, r, 0)),
        ),
        compiler_params=pltpu.CompilerParams(
            dimension_semantics=dims,
            vmem_limit_bytes=32 << 20,
        ),
        cost_estimate=pl.CostEstimate(
            flops=B * rows * lanes,
            transcendentals=0,
            bytes_accessed=bytes_accessed,
        ),
        input_output_aliases={0: 0} if donate_x else {},
    )(x2, pe2)

    out = out2.reshape(B, T, D)
    if pad_t:
        out = out[:, :orig_T, :]
    return out


if __name__ == "__main__":
    # Shapes consistent with the module: batch=2, seq=8, hidden=32.
    B, T, D = 2, 8, 32
    max_len = 64  # semantics identical to max_len=5000 for T <= max_len

    key = jax.random.PRNGKey(0)
    x = jax.random.normal(key, (B, T, D), dtype=jnp.float32)
    pe = make_positional_encoding(d_model=D, max_len=max_len)

    out = jax.block_until_ready(positional_encoding_forward(x, pe))
    ref = x + pe[None, :T, :]
    assert out.shape == x.shape and out.dtype == x.dtype
    assert jnp.allclose(out, ref, atol=1e-6, rtol=1e-6)

    # Second check: ragged shape (T*D not divisible by 128) exercises the pad path.
    B2, T2, D2 = 2, 5, 24
    x2_in = jax.random.normal(jax.random.PRNGKey(1), (B2, T2, D2), dtype=jnp.float32)
    pe2_buf = make_positional_encoding(d_model=D2, max_len=32)
    out2 = jax.block_until_ready(positional_encoding_forward(x2_in, pe2_buf))
    ref2 = x2_in + pe2_buf[None, :T2, :]
    assert out2.shape == x2_in.shape
    assert jnp.allclose(out2, ref2, atol=1e-6, rtol=1e-6)

    print("KERNEL_OK")
</pallas_src>

<mosaic_0001>
module attributes {stable_mosaic.version = 11 : i64} {
  func.func @_pe_add_kernel(%arg0: i32, %arg1: i32, %arg2: memref<2x2x128xf32, #tpu.memory_space<vmem>>, %arg3: memref<2x128xf32, #tpu.memory_space<vmem>>, %arg4: memref<2x2x128xf32, #tpu.memory_space<vmem>>) attributes {dimension_semantics = [#tpu.dimension_semantics<parallel>, #tpu.dimension_semantics<arbitrary>], iteration_bounds = array<i64: 1, 1>, scalar_prefetch = 0 : i64, scratch_operands = 0 : i64, tpu.core_type = #tpu.core_type<tc>, window_params = [{transform_indices = @transform_0, window_bounds = array<i64: 2, 2, 128>}, {transform_indices = @transform_1, window_bounds = array<i64: 2, 128>}, {transform_indices = @transform_2, window_bounds = array<i64: 2, 2, 128>}]} {
    %c0 = arith.constant 0 : index
    %c0_0 = arith.constant 0 : index
    %c0_1 = arith.constant 0 : index
    %0 = vector.load %arg2[%c0, %c0_0, %c0_1] : memref<2x2x128xf32, #tpu.memory_space<vmem>>, vector<2x2x128xf32>
    %c0_2 = arith.constant 0 : index
    %c0_3 = arith.constant 0 : index
    %1 = vector.load %arg3[%c0_2, %c0_3] : memref<2x128xf32, #tpu.memory_space<vmem>>, vector<2x128xf32>
    %2 = vector.shape_cast %1 : vector<2x128xf32> to vector<1x2x128xf32>
    %3 = vector.broadcast %2 : vector<1x2x128xf32> to vector<2x2x128xf32>
    %4 = arith.addf %0, %3 : vector<2x2x128xf32>
    %c0_4 = arith.constant 0 : index
    %c0_5 = arith.constant 0 : index
    %c0_6 = arith.constant 0 : index
    %5 = vector.load %arg4[%c0_4, %c0_5, %c0_6] : memref<2x2x128xf32, #tpu.memory_space<vmem>>, vector<2x2x128xf32>
    tpu.vector_store %arg4[%c0_4, %c0_5, %c0_6], %4 {strides = array<i32>} : memref<2x2x128xf32, #tpu.memory_space<vmem>>, vector<2x2x128xf32>,
    return
  }
  func.func @transform_0(%arg0: i32, %arg1: i32) -> (i32, i32, i32) {
    %c0_i32 = arith.constant 0 : i32
    %c0_i32_0 = arith.constant 0 : i32
    return %arg1, %arg0, %c0_i32 : i32, i32, i32
  }
  func.func @transform_1(%arg0: i32, %arg1: i32) -> (i32, i32) {
    %c0_i32 = arith.constant 0 : i32
    %c0_i32_0 = arith.constant 0 : i32
    return %arg0, %c0_i32 : i32, i32
  }
  func.func @transform_2(%arg0: i32, %arg1: i32) -> (i32, i32, i32) {
    %c0_i32 = arith.constant 0 : i32
    %c0_i32_0 = arith.constant 0 : i32
    return %arg1, %arg0, %c0_i32 : i32, i32, i32
  }
}

</mosaic_0001>

<llo_original>
// kernel: tpu_custom_call.1
$region0: #{tpu_custom_call.1}
  #allocation0 [shape = 'u32[]', space=smem, size = 0x4, offset = 0x4, fixed_abs, tag = 'smem constant byte address 0x4 - core index']
  #allocation1 [shape = 'u32[144,128]{1,0:T(1,128)}', space=vmem, size = 0x12000, scoped, tag = 'internal scratch']
  %s0 = inlined_call_operand.hbm [shape: f32[2,2,128], index: 0, kind: input, shape index: {}]
  %s1 = inlined_call_operand.vmem [shape: f32[2,128], index: 1, kind: input, shape index: {}]
  %s2 = inlined_call_operand.hbm [shape: f32[2,2,128], index: 2, kind: output, shape index: {}]
  %s3 = sld [smem:[#allocation0]]
  $region22: #{tpu_custom_call.1} parent=0
    _
  %s5 = ssub.s32 1, %s3
  %s6 = scalar_select 0, %s5, %s3
  $region1: #{tpu_custom_call.1} parent=0
    #allocation2 [shape = 'u8[2048]{0}', space=vmem, size = 0x800, scoped, tag = 'input window, operand 0, single buffered']
    #allocation3 [shape = 's32[1]{0}', space=sflag, size = 0x4, scoped, tag = 'scoped memory for tpu_custom_call.1']
    #allocation4 [shape = 's32[1]{0}', space=sflag, size = 0x4, scoped, tag = 'scoped memory for tpu_custom_call.1']
    #allocation5 [shape = 'u8[2048]{0}', space=vmem, size = 0x800, scoped, tag = 'output window, operand 0, single buffered']
    %7 = vsyncpa [#allocation3], 0
    %8 = vsyncpa [#allocation4], 0
    // Predicated region
    $region2: #{tpu_custom_call.1} parent=1 // pred_check
      _
    $region3: #{tpu_custom_call.1} parent=1 // pred_check_branch
      %10 = sbr.rel (0) target = $region5
    $region4: #{tpu_custom_call.1} parent=1 // pred_region
      %s12 = ssub.s32 64, 64
      %13 = vsyncadd [#allocation3], %s12
      %s14 = sshll.u32 [#allocation2], 4
      %s15 = int_to_ptr.vmem [resolvable:$true] %s14
      %20 = dma.hbm_to_vmem [thread:$0]  %s0, 64, %s15, [#allocation3], 32, 32, 2
    $region5: #{tpu_custom_call.1} parent=1 // pred_fallthru
      _
    // Predicated region
    $region6: #{tpu_custom_call.1} parent=1 // pred_check
      _
    $region7: #{tpu_custom_call.1} parent=1 // pred_check_branch
      %22 = sbr.rel (0) target = $region9
    $region8: #{tpu_custom_call.1} parent=1 // pred_region
      _
    $region9: #{tpu_custom_call.1} parent=1 // pred_fallthru
      _
    // Predicated region
    $region10: #{tpu_custom_call.1} parent=1 // pred_check
      _
    $region11: #{tpu_custom_call.1} parent=1 // pred_check_branch
      %24 = sbr.rel (0) target = $region13
    $region12: #{tpu_custom_call.1} parent=1 // pred_region
      %25 = dma.done [#allocation3], 64
    $region13: #{tpu_custom_call.1} parent=1 // pred_fallthru
      _
    %v26 = vld [vmem:[#allocation2] sm:$0x3]
    %v27 = vld [vmem:[#allocation2 + $0x2] sm:$0x3]
    %v28 = vld [vmem:[%s1] sm:$0x3]
    %v29 = vadd.f32 %v26, %v28
    %v30 = vadd.f32 %v27, %v28
    %31 = vst [vmem:[#allocation5] sm:$0x3] %v29
    %32 = vst [vmem:[#allocation5 + $0x2] sm:$0x3] %v30
    // Predicated region
    $region14: #{tpu_custom_call.1} parent=1 // pred_check
      _
    $region15: #{tpu_custom_call.1} parent=1 // pred_check_branch
      %34 = sbr.rel (0) target = $region17
    $region16: #{tpu_custom_call.1} parent=1 // pred_region
      %s36 = ssub.s32 64, 64
      %37 = vsyncadd [#allocation4], %s36
      %s38 = sshll.u32 [#allocation5], 4
      %s39 = int_to_ptr.vmem [resolvable:$true] %s38
      %44 = dma.vmem_to_hbm [thread:$0]  %s39, 64, %s2, [#allocation4], 32, 32, 2
    $region17: #{tpu_custom_call.1} parent=1 // pred_fallthru
      _
    // Predicated region
    $region18: #{tpu_custom_call.1} parent=1 // pred_check
      _
    $region19: #{tpu_custom_call.1} parent=1 // pred_check_branch
      %46 = sbr.rel (0) target = $region21
    $region20: #{tpu_custom_call.1} parent=1 // pred_region
      %47 = dma.done [#allocation4], 64
    $region21: #{tpu_custom_call.1} parent=1 // pred_fallthru
      _
    %48 = vsyncpa [#allocation3], 1
    %49 = vsyncpa [#allocation4], 1

</llo_original>
